<compile_context>
chip_gen: v6e
topology: v6e:2x2x1
jax: 0.10.0
libtpu: 0.0.40
codegen_flags: <defaults>
</compile_context>

<pallas_src>
import math

import jax
import jax.numpy as jnp
from jax.experimental import pallas as pl
from jax.experimental.pallas import tpu as pltpu


def _round_up(x, m):
    return ((x + m - 1) // m) * m


def _pick_col_tile(d_cols, block_n):
    """Largest multiple of 128 that divides d_cols and is <= block_n."""
    assert d_cols % 128 == 0
    max_k = max(min(block_n, d_cols) // 128, 1)
    for k in range(max_k, 0, -1):
        if d_cols % (k * 128) == 0:
            return k * 128
    return 128


# ---------------------------------------------------------------------------
# Kernel A: sinusoidal embedding + first Linear + SiLU  ->  h (bf16)
# ---------------------------------------------------------------------------
def _embed_silu_kernel(t_ref, freqs_ref, w1c_ref, w1s_ref, b1_ref, h_ref):
    # t_ref:     [tb, 1]    f32 timesteps for this batch tile
    # freqs_ref: [1, C//2]  f32 (grid-resident)
    # w1c_ref:   [C//2, D]  bf16 rows of W1 that multiply cos(args) (resident)
    # w1s_ref:   [C//2, D]  bf16 rows of W1 that multiply sin(args) (resident)
    # b1_ref:    [1, D]     f32 (resident)
    # h_ref:     [tb, D]    bf16 output: SiLU(embed @ W1 + b1)
    args = t_ref[...] * freqs_ref[...]                  # [tb, C//2], f32 broadcast
    cos_e = jnp.cos(args).astype(jnp.bfloat16)
    sin_e = jnp.sin(args).astype(jnp.bfloat16)
    # The [cos, sin] lane concat of the reference is replaced by two bf16 MXU
    # dots (f32 accumulation) over the two row-halves of W1.
    h = jnp.dot(cos_e, w1c_ref[...], preferred_element_type=jnp.float32)
    h = h + jnp.dot(sin_e, w1s_ref[...], preferred_element_type=jnp.float32)
    h = h + b1_ref[...]
    h_ref[...] = (h * jax.nn.sigmoid(h)).astype(h_ref.dtype)   # SiLU


# ---------------------------------------------------------------------------
# Kernel B: second Linear  out = h @ W2 + b2   (both grid axes parallel)
# ---------------------------------------------------------------------------
def _proj_kernel(h_ref, w2_ref, b2_ref, out_ref):
    # h_ref:   [tb, D]   bf16 (stays resident across the column axis)
    # w2_ref:  [D, tn]   bf16 column slab of W2
    # b2_ref:  [1, tn]   f32
    # out_ref: [tb, tn]  f32
    out = jnp.dot(h_ref[...], w2_ref[...], preferred_element_type=jnp.float32)
    out_ref[...] = (out + b2_ref[...]).astype(out_ref.dtype)


def timestep_embedding(timesteps, w1, b1, w2, b2, *, max_period=10000.0,
                       block_b=128, block_n=512, out_dtype=jnp.float32):
    """timesteps: [B] f32; w1: [C, 4C]; w2: [4C, 4C]. Returns [B, 4C]."""
    B = timesteps.shape[0]
    C, D = w1.shape                      # D = 4 * C
    half = C // 2

    # Sinusoidal frequencies exactly as in the PyTorch module's forward:
    #   exp(-log(max_period) * arange(C//2) / (C * 2))
    freqs = jnp.exp(
        -math.log(max_period) * jnp.arange(half, dtype=jnp.float32) / (C * 2)
    ).reshape(1, half)

    # bf16 weights: halves HBM->VMEM traffic and feeds the MXU bf16 x bf16.
    w1c = w1[:half].astype(jnp.bfloat16)     # multiplies cos(args)
    w1s = w1[half:].astype(jnp.bfloat16)     # multiplies sin(args)
    b1_2d = b1.reshape(1, D).astype(jnp.float32)

    # Batch tiling (multiple of 8 sublanes); pad B so the grid divides evenly.
    tb = min(block_b, _round_up(B, 8))
    Bp = _round_up(B, tb)
    t2d = jnp.zeros((Bp, 1), jnp.float32).at[:B, 0].set(timesteps.astype(jnp.float32))

    # Output-column tiling for W2: pad the column axis to a multiple of 128 so
    # the tile is always lane-dense and never falls back to the full matrix.
    Dp = _round_up(D, 128)
    tn = _pick_col_tile(Dp, block_n)
    w2b = w2.astype(jnp.bfloat16)
    b2_2d = b2.reshape(1, D).astype(jnp.float32)
    if Dp != D:
        w2b = jnp.pad(w2b, ((0, 0), (0, Dp - D)))
        b2_2d = jnp.pad(b2_2d, ((0, 0), (0, Dp - D)))

    # Explicit scoped-VMEM budgets (upper bound: everything double-buffered).
    vmem_a = (2 * tb * 4 + 2 * half * 4 + 2 * C * D * 2 + 2 * D * 4
              + 2 * tb * D * 2) + (4 << 20)
    vmem_b = (2 * tb * D * 2 + 2 * D * tn * 2 + 2 * tn * 4
              + 2 * tb * tn * 4) + (4 << 20)
    vmem_a = min(max(vmem_a, 8 << 20), 100 << 20)
    vmem_b = min(max(vmem_b, 8 << 20), 100 << 20)

    grid_a = (Bp // tb,)
    grid_b = (Bp // tb, Dp // tn)

    def _run(single_buffer_residents):
        if single_buffer_residents:
            def rspec(shape, imap):
                # Constant-index residents: single buffer halves their VMEM cost.
                return pl.BlockSpec(shape, imap, pipeline_mode=pl.Buffered(1))
        else:
            def rspec(shape, imap):
                return pl.BlockSpec(shape, imap)

        h = pl.pallas_call(
            _embed_silu_kernel,
            out_shape=jax.ShapeDtypeStruct((Bp, D), jnp.bfloat16),
            grid=grid_a,
            in_specs=[
                pl.BlockSpec((tb, 1), lambda i: (i, 0)),     # timesteps tile
                rspec((1, half), lambda i: (0, 0)),          # freqs (resident)
                rspec((half, D), lambda i: (0, 0)),          # W1 cos rows
                rspec((half, D), lambda i: (0, 0)),          # W1 sin rows
                rspec((1, D), lambda i: (0, 0)),             # b1
            ],
            out_specs=pl.BlockSpec((tb, D), lambda i: (i, 0)),
            compiler_params=pltpu.CompilerParams(
                dimension_semantics=("parallel",),
                vmem_limit_bytes=vmem_a),
        )(t2d, freqs, w1c, w1s, b1_2d)

        out = pl.pallas_call(
            _proj_kernel,
            out_shape=jax.ShapeDtypeStruct((Bp, Dp), jnp.float32),
            grid=grid_b,
            in_specs=[
                pl.BlockSpec((tb, D), lambda i, j: (i, 0)),  # h (resident per i)
                pl.BlockSpec((D, tn), lambda i, j: (0, j)),  # W2 column slab
                pl.BlockSpec((1, tn), lambda i, j: (0, j)),  # b2 slab
            ],
            out_specs=pl.BlockSpec((tb, tn), lambda i, j: (i, j)),
            compiler_params=pltpu.CompilerParams(
                dimension_semantics=("parallel", "parallel"),
                vmem_limit_bytes=vmem_b),
        )(h, w2b, b2_2d)
        return out

    try:
        out = _run(True)
    except Exception:
        # Fallback if this JAX build rejects pipeline_mode=pl.Buffered(1).
        out = _run(False)

    return out[:B, :D].astype(out_dtype)


# ---------------------------------------------------------------------------
# Parameter construction + references (for the self-test)
# ---------------------------------------------------------------------------
def make_params(key, channels):
    """Deterministic synthetic parameters matching the PyTorch module shapes."""
    time_embed_dim = 4 * channels
    k1, k2, k3, k4 = jax.random.split(key, 4)
    # PyTorch-style uniform(-1/sqrt(fan_in), 1/sqrt(fan_in)) init, stored as
    # [in, out] (transposed relative to torch's [out, in]).
    lim1 = 1.0 / math.sqrt(channels)
    lim2 = 1.0 / math.sqrt(time_embed_dim)
    w1 = jax.random.uniform(k1, (channels, time_embed_dim), jnp.float32, -lim1, lim1)
    b1 = jax.random.uniform(k2, (time_embed_dim,), jnp.float32, -lim1, lim1)
    w2 = jax.random.uniform(k3, (time_embed_dim, time_embed_dim), jnp.float32, -lim2, lim2)
    b2 = jax.random.uniform(k4, (time_embed_dim,), jnp.float32, -lim2, lim2)
    return w1, b1, w2, b2


def _embed(timesteps, channels, max_period):
    half = channels // 2
    freqs = jnp.exp(-math.log(max_period)
                    * jnp.arange(half, dtype=jnp.float32) / (channels * 2))
    args = timesteps.astype(jnp.float32)[:, None] * freqs[None]
    return jnp.concatenate([jnp.cos(args), jnp.sin(args)], axis=-1)


def reference_f32(timesteps, w1, b1, w2, b2, max_period=10000.0):
    """Exact module semantics in f32 (no quantization)."""
    e = _embed(timesteps, w1.shape[0], max_period)
    h = jnp.dot(e, w1, precision=jax.lax.Precision.HIGHEST) + b1
    h = h * jax.nn.sigmoid(h)
    return jnp.dot(h, w2, precision=jax.lax.Precision.HIGHEST) + b2


def reference_bf16_mirror(timesteps, w1, b1, w2, b2, max_period=10000.0):
    """Reference that mirrors the kernel's bf16 weight/activation quantization."""
    e = _embed(timesteps, w1.shape[0], max_period)
    e = e.astype(jnp.bfloat16).astype(jnp.float32)
    w1q = w1.astype(jnp.bfloat16).astype(jnp.float32)
    w2q = w2.astype(jnp.bfloat16).astype(jnp.float32)
    h = jnp.dot(e, w1q, precision=jax.lax.Precision.HIGHEST) + b1
    h = h * jax.nn.sigmoid(h)
    h = h.astype(jnp.bfloat16).astype(jnp.float32)
    return jnp.dot(h, w2q, precision=jax.lax.Precision.HIGHEST) + b2


if __name__ == "__main__":
    channels = 32      # -> time_embed_dim = 128
    batch = 8

    key = jax.random.PRNGKey(0)
    k_t, k_p = jax.random.split(key)
    timesteps = jax.random.uniform(k_t, (batch,), jnp.float32, 0.0, 1000.0)
    w1, b1, w2, b2 = make_params(k_p, channels)

    out = timestep_embedding(timesteps, w1, b1, w2, b2)
    out = jax.block_until_ready(out)

    assert out.shape == (batch, 4 * channels)

    # Compare against a reference that mirrors the kernel's deliberate bf16
    # weight/activation quantization (tight), and against the pure-f32 module
    # semantics (loose, covers the ~2^-9 bf16 rounding).
    ref_q = reference_bf16_mirror(timesteps, w1, b1, w2, b2)
    assert jnp.allclose(out, ref_q, atol=1e-2, rtol=1e-2), "mismatch vs bf16-mirrored reference"

    ref_f = reference_f32(timesteps, w1, b1, w2, b2)
    assert jnp.allclose(out, ref_f, atol=5e-2, rtol=5e-2), "mismatch vs f32 reference"

    print("KERNEL_OK")
</pallas_src>

<mosaic_0001>
module attributes {stable_mosaic.version = 11 : i64} {
  func.func @_embed_silu_kernel(%arg0: i32, %arg1: memref<8x1xf32, #tpu.memory_space<vmem>>, %arg2: memref<1x16xf32, #tpu.memory_space<vmem>>, %arg3: memref<16x128xbf16, #tpu.memory_space<vmem>>, %arg4: memref<16x128xbf16, #tpu.memory_space<vmem>>, %arg5: memref<1x128xf32, #tpu.memory_space<vmem>>, %arg6: memref<8x128xbf16, #tpu.memory_space<vmem>>) attributes {dimension_semantics = [#tpu.dimension_semantics<parallel>], iteration_bounds = array<i64: 1>, scalar_prefetch = 0 : i64, scratch_operands = 0 : i64, tpu.core_type = #tpu.core_type<tc>, window_params = [{transform_indices = @transform_0, window_bounds = array<i64: 8, 1>}, {pipeline_mode = #tpu.pipeline_mode<synchronous>, transform_indices = @transform_1, window_bounds = array<i64: 1, 16>}, {pipeline_mode = #tpu.pipeline_mode<synchronous>, transform_indices = @transform_2, window_bounds = array<i64: 16, 128>}, {pipeline_mode = #tpu.pipeline_mode<synchronous>, transform_indices = @transform_3, window_bounds = array<i64: 16, 128>}, {pipeline_mode = #tpu.pipeline_mode<synchronous>, transform_indices = @transform_4, window_bounds = array<i64: 1, 128>}, {transform_indices = @transform_5, window_bounds = array<i64: 8, 128>}]} {
    %c0 = arith.constant 0 : index
    %c0_0 = arith.constant 0 : index
    %0 = vector.load %arg1[%c0, %c0_0] : memref<8x1xf32, #tpu.memory_space<vmem>>, vector<8x1xf32>
    %c0_1 = arith.constant 0 : index
    %c0_2 = arith.constant 0 : index
    %1 = vector.load %arg2[%c0_1, %c0_2] : memref<1x16xf32, #tpu.memory_space<vmem>>, vector<1x16xf32>
    %2 = vector.broadcast %0 : vector<8x1xf32> to vector<8x16xf32>
    %3 = vector.broadcast %1 : vector<1x16xf32> to vector<8x16xf32>
    %4 = arith.mulf %2, %3 : vector<8x16xf32>
    %5 = math.cos %4 : vector<8x16xf32>
    %6 = arith.truncf %5 : vector<8x16xf32> to vector<8x16xbf16>
    %7 = math.sin %4 : vector<8x16xf32>
    %8 = arith.truncf %7 : vector<8x16xf32> to vector<8x16xbf16>
    %c0_3 = arith.constant 0 : index
    %c0_4 = arith.constant 0 : index
    %9 = vector.load %arg3[%c0_3, %c0_4] : memref<16x128xbf16, #tpu.memory_space<vmem>>, vector<16x128xbf16>
    %cst = arith.constant dense<0.000000e+00> : vector<8x128xf32>
    %10 = tpu.matmul %6, %9, %cst {dimension_numbers = #tpu.dot_dimension_numbers<[1], [0], [0], [1], [0, 0, 1, 1], [], []>} : vector<8x16xbf16>, vector<16x128xbf16>, vector<8x128xf32> -> vector<8x128xf32>
    %c0_5 = arith.constant 0 : index
    %c0_6 = arith.constant 0 : index
    %11 = vector.load %arg4[%c0_5, %c0_6] : memref<16x128xbf16, #tpu.memory_space<vmem>>, vector<16x128xbf16>
    %cst_7 = arith.constant dense<0.000000e+00> : vector<8x128xf32>
    %12 = tpu.matmul %8, %11, %cst_7 {dimension_numbers = #tpu.dot_dimension_numbers<[1], [0], [0], [1], [0, 0, 1, 1], [], []>} : vector<8x16xbf16>, vector<16x128xbf16>, vector<8x128xf32> -> vector<8x128xf32>
    %13 = arith.addf %10, %12 : vector<8x128xf32>
    %c0_8 = arith.constant 0 : index
    %c0_9 = arith.constant 0 : index
    %14 = vector.load %arg5[%c0_8, %c0_9] : memref<1x128xf32, #tpu.memory_space<vmem>>, vector<1x128xf32>
    %15 = vector.broadcast %14 : vector<1x128xf32> to vector<8x128xf32>
    %16 = arith.addf %13, %15 : vector<8x128xf32>
    %17 = arith.negf %16 : vector<8x128xf32>
    %18 = math.exp %17 : vector<8x128xf32>
    %cst_10 = arith.constant 1.000000e+00 : f32
    %19 = vector.broadcast %cst_10 : f32 to vector<8x128xf32>
    %20 = arith.addf %19, %18 : vector<8x128xf32>
    %21 = arith.divf %19, %20 : vector<8x128xf32>
    %22 = arith.mulf %16, %21 : vector<8x128xf32>
    %23 = arith.truncf %22 : vector<8x128xf32> to vector<8x128xbf16>
    %c0_11 = arith.constant 0 : index
    %c0_12 = arith.constant 0 : index
    %24 = vector.load %arg6[%c0_11, %c0_12] : memref<8x128xbf16, #tpu.memory_space<vmem>>, vector<8x128xbf16>
    tpu.vector_store %arg6[%c0_11, %c0_12], %23 {strides = array<i32>} : memref<8x128xbf16, #tpu.memory_space<vmem>>, vector<8x128xbf16>,
    return
  }
  func.func @transform_0(%arg0: i32) -> (i32, i32) {
    %c0_i32 = arith.constant 0 : i32
    %c0_i32_0 = arith.constant 0 : i32
    return %arg0, %c0_i32 : i32, i32
  }
  func.func @transform_1(%arg0: i32) -> (i32, i32) {
    %c0_i32 = arith.constant 0 : i32
    %c0_i32_0 = arith.constant 0 : i32
    %c0_i32_1 = arith.constant 0 : i32
    return %c0_i32, %c0_i32_0 : i32, i32
  }
  func.func @transform_2(%arg0: i32) -> (i32, i32) {
    %c0_i32 = arith.constant 0 : i32
    %c0_i32_0 = arith.constant 0 : i32
    %c0_i32_1 = arith.constant 0 : i32
    return %c0_i32, %c0_i32_0 : i32, i32
  }
  func.func @transform_3(%arg0: i32) -> (i32, i32) {
    %c0_i32 = arith.constant 0 : i32
    %c0_i32_0 = arith.constant 0 : i32
    %c0_i32_1 = arith.constant 0 : i32
    return %c0_i32, %c0_i32_0 : i32, i32
  }
  func.func @transform_4(%arg0: i32) -> (i32, i32) {
    %c0_i32 = arith.constant 0 : i32
    %c0_i32_0 = arith.constant 0 : i32
    %c0_i32_1 = arith.constant 0 : i32
    return %c0_i32, %c0_i32_0 : i32, i32
  }
  func.func @transform_5(%arg0: i32) -> (i32, i32) {
    %c0_i32 = arith.constant 0 : i32
    %c0_i32_0 = arith.constant 0 : i32
    return %arg0, %c0_i32 : i32, i32
  }
}

module attributes {stable_mosaic.version = 11 : i64} {
  func.func @_embed_silu_kernel(%arg0: i32, %arg1: memref<8x1xf32, #tpu.memory_space<vmem>>, %arg2: memref<1x16xf32, #tpu.memory_space<vmem>>, %arg3: memref<16x128xbf16, #tpu.memory_space<vmem>>, %arg4: memref<16x128xbf16, #tpu.memory_space<vmem>>, %arg5: memref<1x128xf32, #tpu.memory_space<vmem>>, %arg6: memref<8x128xbf16, #tpu.memory_space<vmem>>) attributes {dimension_semantics = [#tpu.dimension_semantics<parallel>], iteration_bounds = array<i64: 1>, scalar_prefetch = 0 : i64, scratch_operands = 0 : i64, tpu.core_type = #tpu.core_type<tc>, window_params = [{transform_indices = @transform_0, window_bounds = array<i64: 8, 1>}, {pipeline_mode = #tpu.pipeline_mode<synchronous>, transform_indices = @transform_1, window_bounds = array<i64: 1, 16>}, {pipeline_mode = #tpu.pipeline_mode<synchronous>, transform_indices = @transform_2, window_bounds = array<i64: 16, 128>}, {pipeline_mode = #tpu.pipeline_mode<synchronous>, transform_indices = @transform_3, window_bounds = array<i64: 16, 128>}, {pipeline_mode = #tpu.pipeline_mode<synchronous>, transform_indices = @transform_4, window_bounds = array<i64: 1, 128>}, {transform_indices = @transform_5, window_bounds = array<i64: 8, 128>}]} {
    %c0 = arith.constant 0 : index
    %c0_0 = arith.constant 0 : index
    %0 = vector.load %arg1[%c0, %c0_0] : memref<8x1xf32, #tpu.memory_space<vmem>>, vector<8x1xf32>
    %c0_1 = arith.constant 0 : index
    %c0_2 = arith.constant 0 : index
    %1 = vector.load %arg2[%c0_1, %c0_2] : memref<1x16xf32, #tpu.memory_space<vmem>>, vector<1x16xf32>
    %2 = vector.broadcast %0 : vector<8x1xf32> to vector<8x16xf32>
    %3 = vector.broadcast %1 : vector<1x16xf32> to vector<8x16xf32>
    %4 = arith.mulf %2, %3 : vector<8x16xf32>
    %5 = math.cos %4 : vector<8x16xf32>
    %6 = arith.truncf %5 : vector<8x16xf32> to vector<8x16xbf16>
    %7 = math.sin %4 : vector<8x16xf32>
    %8 = arith.truncf %7 : vector<8x16xf32> to vector<8x16xbf16>
    %c0_3 = arith.constant 0 : index
    %c0_4 = arith.constant 0 : index
    %9 = vector.load %arg3[%c0_3, %c0_4] : memref<16x128xbf16, #tpu.memory_space<vmem>>, vector<16x128xbf16>
    %cst = arith.constant dense<0.000000e+00> : vector<8x128xf32>
    %10 = tpu.matmul %6, %9, %cst {dimension_numbers = #tpu.dot_dimension_numbers<[1], [0], [0], [1], [0, 0, 1, 1], [], []>} : vector<8x16xbf16>, vector<16x128xbf16>, vector<8x128xf32> -> vector<8x128xf32>
    %c0_5 = arith.constant 0 : index
    %c0_6 = arith.constant 0 : index
    %11 = vector.load %arg4[%c0_5, %c0_6] : memref<16x128xbf16, #tpu.memory_space<vmem>>, vector<16x128xbf16>
    %cst_7 = arith.constant dense<0.000000e+00> : vector<8x128xf32>
    %12 = tpu.matmul %8, %11, %cst_7 {dimension_numbers = #tpu.dot_dimension_numbers<[1], [0], [0], [1], [0, 0, 1, 1], [], []>} : vector<8x16xbf16>, vector<16x128xbf16>, vector<8x128xf32> -> vector<8x128xf32>
    %13 = arith.addf %10, %12 : vector<8x128xf32>
    %c0_8 = arith.constant 0 : index
    %c0_9 = arith.constant 0 : index
    %14 = vector.load %arg5[%c0_8, %c0_9] : memref<1x128xf32, #tpu.memory_space<vmem>>, vector<1x128xf32>
    %15 = vector.broadcast %14 : vector<1x128xf32> to vector<8x128xf32>
    %16 = arith.addf %13, %15 : vector<8x128xf32>
    %17 = arith.negf %16 : vector<8x128xf32>
    %18 = math.exp %17 : vector<8x128xf32>
    %cst_10 = arith.constant 1.000000e+00 : f32
    %19 = vector.broadcast %cst_10 : f32 to vector<8x128xf32>
    %20 = arith.addf %19, %18 : vector<8x128xf32>
    %21 = arith.divf %19, %20 : vector<8x128xf32>
    %22 = arith.mulf %16, %21 : vector<8x128xf32>
    %23 = arith.truncf %22 : vector<8x128xf32> to vector<8x128xbf16>
    %c0_11 = arith.constant 0 : index
    %c0_12 = arith.constant 0 : index
    %24 = vector.load %arg6[%c0_11, %c0_12] : memref<8x128xbf16, #tpu.memory_space<vmem>>, vector<8x128xbf16>
    tpu.vector_store %arg6[%c0_11, %c0_12], %23 {strides = array<i32>} : memref<8x128xbf16, #tpu.memory_space<vmem>>, vector<8x128xbf16>,
    return
  }
  func.func @transform_0(%arg0: i32) -> (i32, i32) {
    %c0_i32 = arith.constant 0 : i32
    %c0_i32_0 = arith.constant 0 : i32
    return %arg0, %c0_i32 : i32, i32
  }
  func.func @transform_1(%arg0: i32) -> (i32, i32) {
    %c0_i32 = arith.constant 0 : i32
    %c0_i32_0 = arith.constant 0 : i32
    %c0_i32_1 = arith.constant 0 : i32
    return %c0_i32, %c0_i32_0 : i32, i32
  }
  func.func @transform_2(%arg0: i32) -> (i32, i32) {
    %c0_i32 = arith.constant 0 : i32
    %c0_i32_0 = arith.constant 0 : i32
    %c0_i32_1 = arith.constant 0 : i32
    return %c0_i32, %c0_i32_0 : i32, i32
  }
  func.func @transform_3(%arg0: i32) -> (i32, i32) {
    %c0_i32 = arith.constant 0 : i32
    %c0_i32_0 = arith.constant 0 : i32
    %c0_i32_1 = arith.constant 0 : i32
    return %c0_i32, %c0_i32_0 : i32, i32
  }
  func.func @transform_4(%arg0: i32) -> (i32, i32) {
    %c0_i32 = arith.constant 0 : i32
    %c0_i32_0 = arith.constant 0 : i32
    %c0_i32_1 = arith.constant 0 : i32
    return %c0_i32, %c0_i32_0 : i32, i32
  }
  func.func @transform_5(%arg0: i32) -> (i32, i32) {
    %c0_i32 = arith.constant 0 : i32
    %c0_i32_0 = arith.constant 0 : i32
    return %arg0, %c0_i32 : i32, i32
  }
}

</mosaic_0001>

<llo_original>
// kernel: tpu_custom_call.1
$region0: #{tpu_custom_call.1}
  #allocation0 [shape = 'u32[]', space=smem, size = 0x4, offset = 0x4, fixed_abs, tag = 'smem constant byte address 0x4 - core index']
  #allocation1 [shape = 'u32[144,128]{1,0:T(1,128)}', space=vmem, size = 0x12000, scoped, tag = 'internal scratch']
  %s0 = inlined_call_operand.vmem [shape: f32[8,1], index: 0, kind: input, shape index: {}]
  %s1 = inlined_call_operand.vmem [shape: f32[1,16], index: 1, kind: input, shape index: {}]
  %s2 = inlined_call_operand.vmem [shape: bf16[16,128], index: 2, kind: input, shape index: {}]
  %s3 = inlined_call_operand.hbm [shape: bf16[16,128], index: 3, kind: input, shape index: {}]
  %s4 = inlined_call_operand.vmem [shape: f32[1,128], index: 4, kind: input, shape index: {}]
  %s5 = inlined_call_operand.hbm [shape: bf16[8,128], index: 5, kind: output, shape index: {}]
  %s6 = sld [smem:[#allocation0]]
  $region34: #{tpu_custom_call.1} parent=0
    _
  %s8 = ssub.s32 1, %s6
  %s9 = scalar_select 0, %s8, %s6
  $region1: #{tpu_custom_call.1} parent=0
    #allocation2 [shape = 'u8[4096]{0}', space=vmem, size = 0x1000, scoped, tag = 'input window, operand 3, single buffered']
    #allocation3 [shape = 's32[1]{0}', space=sflag, size = 0x4, scoped, tag = 'scoped memory for tpu_custom_call.1']
    #allocation4 [shape = 's32[1]{0}', space=sflag, size = 0x4, scoped, tag = 'scoped memory for tpu_custom_call.1']
    #allocation5 [shape = 'u8[2048]{0}', space=vmem, size = 0x800, scoped, tag = 'output window, operand 0, single buffered']
    %10 = vsyncpa [#allocation3], 0
    %11 = vsyncpa [#allocation4], 0
    // Predicated region
    $region2: #{tpu_custom_call.1} parent=1 // pred_check
      _
    $region3: #{tpu_custom_call.1} parent=1 // pred_check_branch
      %13 = sbr.rel (0) target = $region5
    $region4: #{tpu_custom_call.1} parent=1 // pred_region
      _
    $region5: #{tpu_custom_call.1} parent=1 // pred_fallthru
      _
    // Predicated region
    $region6: #{tpu_custom_call.1} parent=1 // pred_check
      _
    $region7: #{tpu_custom_call.1} parent=1 // pred_check_branch
      %15 = sbr.rel (0) target = $region9
    $region8: #{tpu_custom_call.1} parent=1 // pred_region
      _
    $region9: #{tpu_custom_call.1} parent=1 // pred_fallthru
      _
    // Predicated region
    $region10: #{tpu_custom_call.1} parent=1 // pred_check
      _
    $region11: #{tpu_custom_call.1} parent=1 // pred_check_branch
      %17 = sbr.rel (0) target = $region13
    $region12: #{tpu_custom_call.1} parent=1 // pred_region
      _
    $region13: #{tpu_custom_call.1} parent=1 // pred_fallthru
      _
    // Predicated region
    $region14: #{tpu_custom_call.1} parent=1 // pred_check
      _
    $region15: #{tpu_custom_call.1} parent=1 // pred_check_branch
      %19 = sbr.rel (0) target = $region17
    $region16: #{tpu_custom_call.1} parent=1 // pred_region
      %s21 = ssub.s32 128, 128
      %22 = vsyncadd [#allocation3], %s21
      %s23 = sshll.u32 [#allocation2], 4
      %s24 = int_to_ptr.vmem [resolvable:$true] %s23
      %29 = dma.hbm_to_vmem [thread:$0]  %s3, 128, %s24, [#allocation3], 64, 64, 4
    $region17: #{tpu_custom_call.1} parent=1 // pred_fallthru
      _
    // Predicated region
    $region18: #{tpu_custom_call.1} parent=1 // pred_check
      _
    $region19: #{tpu_custom_call.1} parent=1 // pred_check_branch
      %31 = sbr.rel (0) target = $region21
    $region20: #{tpu_custom_call.1} parent=1 // pred_region
      _
    $region21: #{tpu_custom_call.1} parent=1 // pred_fallthru
      _
    // Predicated region
    $region22: #{tpu_custom_call.1} parent=1 // pred_check
      _
    $region23: #{tpu_custom_call.1} parent=1 // pred_check_branch
      %33 = sbr.rel (0) target = $region25
    $region24: #{tpu_custom_call.1} parent=1 // pred_region
      %34 = dma.done [#allocation3], 128
    $region25: #{tpu_custom_call.1} parent=1 // pred_fallthru
      _
    %v36 = vld [vmem:[%s0] sm:$0xff]
    %v37 = vld [vmem:[%s1] sm:$0x1]
    %39 = vset.pattern.permute.xlu0 0
    %40 = vperm.xlu0 %39, %v36
    %v41 = vpop.permute.xlu0 %40
    %v44 = vlaneseq
    %v45 = vshrl.u32 %v44, 7
    %v46 = vsub.s32 0, %v45
    %v47 = vrot.slane %v37, %v46
    %v49 = vmul.f32 %v41, %v47
    %v50 = vand.u32 2147483647, %v49
    %vm51 = vcmp.le.f32.partialorder %v50, 0.7853982
    %vm52 = vcmp.lt.s32.totalorder %v49, 0
    %v53 = vand.u32 %v49, 2139095040
    %v54 = vshrl.u32 %v53, 23
    %v55 = vsub.s32 %v54, 127
    %v56 = vand.u32 2147483647, %v49
    %v57 = vand.u32 %v56, 8388607
    %v58 = vor.u32 %v57, 8388608
    %v59 = vsub.s32 0, %v58
    %v60 = vadd.s32 %v55, 1
    %vm61 = vcmp.gt.s32.totalorder %v60, 0
    %v62 = vsel %vm61, %v60, 0
    %v63 = vshrl.u32 %v62, 5
    %v64 = vand.u32 %v62, 31
    %v65 = vsub.s32 32, %v64
    %v66 = vshrl.u32 683565275, %v65
    %v67 = vshll.u32 683565275, %v64
    %v68 = vshrl.u32 2475754826, %v65
    %v69 = vor.u32 %v67, %v68
    %v70 = vshll.u32 2475754826, %v64
    %v71 = vshrl.u32 2131351028, %v65
    %v72 = vor.u32 %v70, %v71
    %v73 = vshll.u32 2131351028, %v64
    %v74 = vshrl.u32 2102212464, %v65
    %v75 = vor.u32 %v73, %v74
    %v76 = vshll.u32 2102212464, %v64
    %v77 = vshrl.u32 920167782, %v65
    %v78 = vor.u32 %v76, %v77
    %v79 = vshll.u32 920167782, %v64
    %v80 = vshrl.u32 1326507024, %v65
    %v81 = vor.u32 %v79, %v80
    %vm82 = vcmp.lt.s32.totalorder %v63, 1
    %vm83 = vcmp.lt.s32.totalorder %v63, 2
    %vm84 = vcmp.lt.s32.totalorder %v63, 3
    %vm85 = vcmp.lt.s32.totalorder %v63, 4
    %v86 = vsel %vm82, %v66, %v69
    %v87 = vsel %vm85, %v75, 2102212464
    %v88 = vsel %vm84, %v72, %v87
    %v89 = vsel %vm83, %v86, %v88
    %v90 = vsel %vm82, %v69, %v72
    %v91 = vsel %vm85, %v78, 920167782
    %v92 = vsel %vm84, %v75, %v91
    %v93 = vsel %vm83, %v90, %v92
    %v94 = vsel %vm82, %v72, %v75
    %v95 = vsel %vm85, %v81, 1326507024
    %v96 = vsel %vm84, %v78, %v95
    %v97 = vsel %vm83, %v94, %v96
    %v98 = vshll.u32 %v58, 8
    %v99 = vmul.u32.u64.compose %v98, %v97
    %v100 = vextract.low.u32 %v99
    %v101 = vextract.high.u32 %v99
    %v102 = vmul.u32.u64.compose %v98, %v93
    %v103 = vextract.low.u32 %v102
    %v104 = vextract.high.u32 %v102
    %v105 = vmul.u32 %v98, %v89
    %v106 = vadd.s32 %v101, %v103
    %vm107 = vc.u32 %v101, %v103
    %v108 = vadd.s32 %v104, 1
    %v109 = vsel %vm107, %v108, %v104
    %v110 = vadd.s32 %v105, %v109
    %v111 = vadd.s32 %v110, 536870912
    %v112 = vshrl.u32 %v111, 30
    %v113 = vshll.u32 %v112, 30
    %v114 = vsub.s32 %v110, %v113
    %vm115 = vcmp.lt.s32.totalorder %v114, 0
    %v116 = vsub.s32 0, %v114
    %v117 = vsel %vm115, %v116, %v114
    %v118 = vclz %v117
    %v119 = vsub.s32 %v118, 2
    %vm120 = vcmp.gt.s32.totalorder 0, %v119
    %v121 = vsel %vm120, 0, %v119
    %v122 = vsub.s32 32, %v121
    %v123 = vshll.u32 %v114, %v121
    %v124 = vshrl.u32 %v106, %v122
    %v125 = vor.u32 %v123, %v124
    %v126 = vsub.s32 4294967266, %v121
    %v127 = vadd.s32 %v126, 127
    %v128 = vshll.u32 %v127, 23
    %v129 = vor.u32 4788187, %v128
    %v130 = vand.u32 2147483647, %v129
    %v132 = vcvt.s32.f32 %v125
    %v133 = vmul.f32 %v132, %v130
    %v134 = vxor.u32 %v133, 2147483648
    %v135 = vsel %vm52, %v134, %v133
    %v136 = vsub.s32 4, %v112
    %v137 = vsel %vm52, %v136, %v112
    %v138 = vsel %vm51, %v49, %v135
    %v139 = vsel %vm51, 0, %v137
    %v140 = vcosq.f32.pop %v138
    %v141 = vsinq.f32.pop %v138
    %vm142 = vweird.f32 %v49
    %v143 = vand.u32 %v139, 3
    %vm144 = vcmp.lt.s32.totalorder %v143, 2
    %vm145 = vcmp.eq.s32.totalorder %v143, 0
    %v146 = vxor.u32 %v141, 2147483648
    %v147 = vsel %vm145, %v140, %v146
    %vm148 = vcmp.eq.s32.totalorder %v143, 2
    %v149 = vxor.u32 %v140, 2147483648
    %v150 = vsel %vm148, %v149, %v141
    %v151 = vsel %vm144, %v147, %v150
    %v152 = vsel %vm142, nan, %v151
    %v153 = vpack.c.bf16 %v152, %v152
    %v154 = vand.u32 2147483647, %v49
    %vm155 = vcmp.le.f32.partialorder %v154, 0.7853982
    %vm156 = vcmp.lt.s32.totalorder %v49, 0
    %v157 = vand.u32 %v49, 2139095040
    %v158 = vshrl.u32 %v157, 23
    %v159 = vsub.s32 %v158, 127
    %v160 = vand.u32 2147483647, %v49
    %v161 = vand.u32 %v160, 8388607
    %v162 = vor.u32 %v161, 8388608
    %v163 = vsub.s32 0, %v162
    %v164 = vadd.s32 %v159, 1
    %vm165 = vcmp.gt.s32.totalorder %v164, 0
    %v166 = vsel %vm165, %v164, 0
    %v167 = vshrl.u32 %v166, 5
    %v168 = vand.u32 %v166, 31
    %v169 = vsub.s32 32, %v168
    %v170 = vshrl.u32 683565275, %v169
    %v171 = vshll.u32 683565275, %v168
    %v172 = vshrl.u32 2475754826, %v169
    %v173 = vor.u32 %v171, %v172
    %v174 = vshll.u32 2475754826, %v168
    %v175 = vshrl.u32 2131351028, %v169
    %v176 = vor.u32 %v174, %v175
    %v177 = vshll.u32 2131351028, %v168
    %v178 = vshrl.u32 2102212464, %v169
    %v179 = vor.u32 %v177, %v178
    %v180 = vshll.u32 2102212464, %v168
    %v181 = vshrl.u32 920167782, %v169
    %v182 = vor.u32 %v180, %v181
    %v183 = vshll.u32 920167782, %v168
    %v184 = vshrl.u32 1326507024, %v169
    %v185 = vor.u32 %v183, %v184
    %vm186 = vcmp.lt.s32.totalorder %v167, 1
    %vm187 = vcmp.lt.s32.totalorder %v167, 2
    %vm188 = vcmp.lt.s32.totalorder %v167, 3
    %vm189 = vcmp.lt.s32.totalorder %v167, 4
    %v190 = vsel %vm186, %v170, %v173
    %v191 = vsel %vm189, %v179, 2102212464
    %v192 = vsel %vm188, %v176, %v191
    %v193 = vsel %vm187, %v190, %v192
    %v194 = vsel %vm186, %v173, %v176
    %v195 = vsel %vm189, %v182, 920167782
    %v196 = vsel %vm188, %v179, %v195
    %v197 = vsel %vm187, %v194, %v196
    %v198 = vsel %vm186, %v176, %v179
    %v199 = vsel %vm189, %v185, 1326507024
    %v200 = vsel %vm188, %v182, %v199
    %v201 = vsel %vm187, %v198, %v200
    %v202 = vshll.u32 %v162, 8
    %v203 = vmul.u32.u64.compose %v202, %v201
    %v204 = vextract.low.u32 %v203
    %v205 = vextract.high.u32 %v203
    %v206 = vmul.u32.u64.compose %v202, %v197
    %v207 = vextract.low.u32 %v206
    %v208 = vextract.high.u32 %v206
    %v209 = vmul.u32 %v202, %v193
    %v210 = vadd.s32 %v205, %v207
    %vm211 = vc.u32 %v205, %v207
    %v212 = vadd.s32 %v208, 1
    %v213 = vsel %vm211, %v212, %v208
    %v214 = vadd.s32 %v209, %v213
    %v215 = vadd.s32 %v214, 536870912
    %v216 = vshrl.u32 %v215, 30
    %v217 = vshll.u32 %v216, 30
    %v218 = vsub.s32 %v214, %v217
    %vm219 = vcmp.lt.s32.totalorder %v218, 0
    %v220 = vsub.s32 0, %v218
    %v221 = vsel %vm219, %v220, %v218
    %v222 = vclz %v221
    %v223 = vsub.s32 %v222, 2
    %vm224 = vcmp.gt.s32.totalorder 0, %v223
    %v225 = vsel %vm224, 0, %v223
    %v226 = vsub.s32 32, %v225
    %v227 = vshll.u32 %v218, %v225
    %v228 = vshrl.u32 %v210, %v226
    %v229 = vor.u32 %v227, %v228
    %v230 = vsub.s32 4294967266, %v225
    %v231 = vadd.s32 %v230, 127
    %v232 = vshll.u32 %v231, 23
    %v233 = vor.u32 4788187, %v232
    %v234 = vand.u32 2147483647, %v233
    %v236 = vcvt.s32.f32 %v229
    %v237 = vmul.f32 %v236, %v234
    %v238 = vxor.u32 %v237, 2147483648
    %v239 = vsel %vm156, %v238, %v237
    %v240 = vsub.s32 4, %v216
    %v241 = vsel %vm156, %v240, %v216
    %v242 = vsel %vm155, %v49, %v239
    %v243 = vsel %vm155, 0, %v241
    %v244 = vcosq.f32.pop %v242
    %v245 = vsinq.f32.pop %v242
    %vm246 = vweird.f32 %v49
    %v247 = vadd.s32 %v243, 3
    %v248 = vand.u32 %v247, 3
    %vm249 = vcmp.lt.s32.totalorder %v248, 2
    %vm250 = vcmp.eq.s32.totalorder %v248, 0
    %v251 = vxor.u32 %v245, 2147483648
    %v252 = vsel %vm250, %v244, %v251
    %vm253 = vcmp.eq.s32.totalorder %v248, 2
    %v254 = vxor.u32 %v244, 2147483648
    %v255 = vsel %vm253, %v254, %v245
    %v256 = vsel %vm249, %v252, %v255
    %v257 = vsel %vm246, nan, %v256
    %v258 = vpack.c.bf16 %v257, %v257
    %v259 = vld [vmem:[%s2] sm:$0xf]
    %v260 = vld [vmem:[%s2 + $0x4] sm:$0xf]
    %v261 = vld [vmem:[#allocation2] sm:$0xf]
    %v262 = vld [vmem:[#allocation2 + $0x4] sm:$0xf]
    %v265 = vunpack.c.l.b16 %v261
    %v266 = vunpack.c.l.b16 %v262
    %v267 = vpack.c.b16 %v266, %v265
    %vm269 = vcmask 130048
    %v271 = vsel %vm269, %v258, 0
    %273 = vmatprep.subr.bf16.mxu0 0
    %274 = vmatpush1.bf16.msra.mxu0 0
    %275 = vmatprep.subr.bf16.mxu0 0
    %276 = vmatpush1.bf16.msra.mxu0 0
    %277 = vmatprep.subr.bf16.mxu0 0
    %278 = vmatpush1.bf16.msra.mxu0 0
    %279 = vmatprep.subr.bf16.mxu0 0
    %280 = vmatpush1.bf16.msra.mxu0 0
    %281 = vmatprep.subr.bf16.mxu0 0
    %282 = vmatpush1.bf16.msra.mxu0 0
    %283 = vmatprep.subr.bf16.mxu0 0
    %284 = vmatpush1.bf16.msra.mxu0 0
    %285 = vmatprep.subr.bf16.mxu0 0
    %286 = vmatpush1.bf16.msra.mxu0 0
    %287 = vmatprep.subr.bf16.mxu0 0
    %288 = vmatpush1.bf16.msra.mxu0 %v267
    %289 = vmatprep.subr.bf16.mxu0 0
    %290 = vmatpush2.bf16.msra.mxu0 0
    %291 = vmatprep.subr.bf16.mxu0 0
    %292 = vmatpush2.bf16.msra.mxu0 0
    %293 = vmatprep.subr.bf16.mxu0 0
    %294 = vmatpush2.bf16.msra.mxu0 0
    %295 = vmatprep.subr.bf16.mxu0 0
    %296 = vmatpush2.bf16.msra.mxu0 0
    %297 = vmatprep.subr.bf16.mxu0 0
    %298 = vmatpush2.bf16.msra.mxu0 0
    %299 = vmatprep.subr.bf16.mxu0 0
    %300 = vmatpush2.bf16.msra.mxu0 0
    %301 = vmatprep.subr.bf16.mxu0 0
    %302 = vmatpush2.bf16.msra.mxu0 0
    %303 = vmatprep.subr.bf16.mxu0 0
    %304 = vmatpush2.bf16.msra.mxu0 0
    %305 = vmatprep.mubr.bf16.mxu0 0
    %306 = vmatmul.mubr.bf16.gmra.mxu0 %v271
    %v307 = vpop.f32.mrf.mxu0
    %v308 = vadd.f32 0.0, %v307
    %v309 = vpop.f32.mrf.mxu0
    %v310 = vpop.f32.mrf.mxu0
    %v311 = vpop.f32.mrf.mxu0
    %312 = vdwg.mxu0
    %v315 = vunpack.c.l.b16 %v259
    %v316 = vunpack.c.l.b16 %v260
    %v317 = vpack.c.b16 %v316, %v315
    %v320 = vsel %vm269, %v153, 0
    %322 = vmatprep.subr.bf16.mxu0 0
    %323 = vmatpush1.bf16.msra.mxu0 0
    %324 = vmatprep.subr.bf16.mxu0 0
    %325 = vmatpush1.bf16.msra.mxu0 0
    %326 = vmatprep.subr.bf16.mxu0 0
    %327 = vmatpush1.bf16.msra.mxu0 0
    %328 = vmatprep.subr.bf16.mxu0 0
    %329 = vmatpush1.bf16.msra.mxu0 0
    %330 = vmatprep.subr.bf16.mxu0 0
    %331 = vmatpush1.bf16.msra.mxu0 0
    %332 = vmatprep.subr.bf16.mxu0 0
    %333 = vmatpush1.bf16.msra.mxu0 0
    %334 = vmatprep.subr.bf16.mxu0 0
    %335 = vmatpush1.bf16.msra.mxu0 0
    %336 = vmatprep.subr.bf16.mxu0 0
    %337 = vmatpush1.bf16.msra.mxu0 %v317
    %338 = vmatprep.subr.bf16.mxu0 0
    %339 = vmatpush2.bf16.msra.mxu0 0
    %340 = vmatprep.subr.bf16.mxu0 0
    %341 = vmatpush2.bf16.msra.mxu0 0
    %342 = vmatprep.subr.bf16.mxu0 0
    %343 = vmatpush2.bf16.msra.mxu0 0
    %344 = vmatprep.subr.bf16.mxu0 0
    %345 = vmatpush2.bf16.msra.mxu0 0
    %346 = vmatprep.subr.bf16.mxu0 0
    %347 = vmatpush2.bf16.msra.mxu0 0
    %348 = vmatprep.subr.bf16.mxu0 0
    %349 = vmatpush2.bf16.msra.mxu0 0
    %350 = vmatprep.subr.bf16.mxu0 0
    %351 = vmatpush2.bf16.msra.mxu0 0
    %352 = vmatprep.subr.bf16.mxu0 0
    %353 = vmatpush2.bf16.msra.mxu0 0
    %354 = vmatprep.mubr.bf16.mxu0 0
    %355 = vmatmul.mubr.bf16.gmra.mxu0 %v320
    %v356 = vpop.f32.mrf.mxu0
    %v357 = vadd.f32 %v308, %v356
    %v358 = vpop.f32.mrf.mxu0
    %v359 = vpop.f32.mrf.mxu0
    %v360 = vpop.f32.mrf.mxu0
    %361 = vdwg.mxu0
    %v362 = vld [vmem:[%s4] sm:$0x1]
    %v364 = vlaneseq
    %v365 = vshrl.u32 %v364, 7
    %v366 = vsub.s32 0, %v365
    %v367 = vrot.slane %v362, %v366
    %v369 = vadd.f32 %v357, %v367
    %v370 = vxor.u32 %v369, 2147483648
    %v371 = vmul.f32 %v370, 1.442695
    %v372 = vpow.pop %v371
    %v373 = vadd.f32 %v372, 1.0
    %v374 = vrcp.pop %v373
    %v375 = vmul.f32 1.0, %v374
    %v376 = vmul.f32 %v369, %v375
    %v377 = vpack.c.bf16 %v376, %v376
    %378 = vst [vmem:[#allocation5] sm:$0xf] %v377
    // Predicated region
    $region26: #{tpu_custom_call.1} parent=1 // pred_check
      _
    $region27: #{tpu_custom_call.1} parent=1 // pred_check_branch
      %380 = sbr.rel (0) target = $region29
    $region28: #{tpu_custom_call.1} parent=1 // pred_region
      %s382 = ssub.s32 64, 64
      %383 = vsyncadd [#allocation4], %s382
      %s385 = sshll.u32 [#allocation5], 4
      %s386 = int_to_ptr.vmem [resolvable:$true] %s385
      %388 = dma.vmem_to_hbm [thread:$0]  %s386, 64, %s5, [#allocation4]
    $region29: #{tpu_custom_call.1} parent=1 // pred_fallthru
      _
    // Predicated region
    $region30: #{tpu_custom_call.1} parent=1 // pred_check
      _
    $region31: #{tpu_custom_call.1} parent=1 // pred_check_branch
      %390 = sbr.rel (0) target = $region33
    $region32: #{tpu_custom_call.1} parent=1 // pred_region
      %391 = dma.done [#allocation4], 64
    $region33: #{tpu_custom_call.1} parent=1 // pred_fallthru
      _
    %392 = vsyncpa [#allocation3], 1
    %393 = vsyncpa [#allocation4], 1

// kernel: tpu_custom_call.1
$region0: #{tpu_custom_call.1}
  #allocation0 [shape = 'u32[]', space=smem, size = 0x4, offset = 0x4, fixed_abs, tag = 'smem constant byte address 0x4 - core index']
  #allocation1 [shape = 'u32[144,128]{1,0:T(1,128)}', space=vmem, size = 0x12000, scoped, tag = 'internal scratch']
  %s0 = inlined_call_operand.vmem [shape: f32[8,1], index: 0, kind: input, shape index: {}]
  %s1 = inlined_call_operand.vmem [shape: f32[1,16], index: 1, kind: input, shape index: {}]
  %s2 = inlined_call_operand.vmem [shape: bf16[16,128], index: 2, kind: input, shape index: {}]
  %s3 = inlined_call_operand.hbm [shape: bf16[16,128], index: 3, kind: input, shape index: {}]
  %s4 = inlined_call_operand.vmem [shape: f32[1,128], index: 4, kind: input, shape index: {}]
  %s5 = inlined_call_operand.hbm [shape: bf16[8,128], index: 5, kind: output, shape index: {}]
  %s6 = sld [smem:[#allocation0]]
  $region34: #{tpu_custom_call.1} parent=0
    _
  %s8 = ssub.s32 1, %s6
  %s9 = scalar_select 0, %s8, %s6
  $region1: #{tpu_custom_call.1} parent=0
    #allocation2 [shape = 'u8[4096]{0}', space=vmem, size = 0x1000, scoped, tag = 'input window, operand 3, single buffered']
    #allocation3 [shape = 's32[1]{0}', space=sflag, size = 0x4, scoped, tag = 'scoped memory for tpu_custom_call.1']
    #allocation4 [shape = 's32[1]{0}', space=sflag, size = 0x4, scoped, tag = 'scoped memory for tpu_custom_call.1']
    #allocation5 [shape = 'u8[2048]{0}', space=vmem, size = 0x800, scoped, tag = 'output window, operand 0, single buffered']
    %10 = vsyncpa [#allocation3], 0
    %11 = vsyncpa [#allocation4], 0
    // Predicated region
    $region2: #{tpu_custom_call.1} parent=1 // pred_check
      _
    $region3: #{tpu_custom_call.1} parent=1 // pred_check_branch
      %13 = sbr.rel (0) target = $region5
    $region4: #{tpu_custom_call.1} parent=1 // pred_region
      _
    $region5: #{tpu_custom_call.1} parent=1 // pred_fallthru
      _
    // Predicated region
    $region6: #{tpu_custom_call.1} parent=1 // pred_check
      _
    $region7: #{tpu_custom_call.1} parent=1 // pred_check_branch
      %15 = sbr.rel (0) target = $region9
    $region8: #{tpu_custom_call.1} parent=1 // pred_region
      _
    $region9: #{tpu_custom_call.1} parent=1 // pred_fallthru
      _
    // Predicated region
    $region10: #{tpu_custom_call.1} parent=1 // pred_check
      _
    $region11: #{tpu_custom_call.1} parent=1 // pred_check_branch
      %17 = sbr.rel (0) target = $region13
    $region12: #{tpu_custom_call.1} parent=1 // pred_region
      _
    $region13: #{tpu_custom_call.1} parent=1 // pred_fallthru
      _
    // Predicated region
    $region14: #{tpu_custom_call.1} parent=1 // pred_check
      _
    $region15: #{tpu_custom_call.1} parent=1 // pred_check_branch
      %19 = sbr.rel (0) target = $region17
    $region16: #{tpu_custom_call.1} parent=1 // pred_region
      %s21 = ssub.s32 128, 128
      %22 = vsyncadd [#allocation3], %s21
      %s23 = sshll.u32 [#allocation2], 4
      %s24 = int_to_ptr.vmem [resolvable:$true] %s23
      %29 = dma.hbm_to_vmem [thread:$0]  %s3, 128, %s24, [#allocation3], 64, 64, 4
    $region17: #{tpu_custom_call.1} parent=1 // pred_fallthru
      _
    // Predicated region
    $region18: #{tpu_custom_call.1} parent=1 // pred_check
      _
    $region19: #{tpu_custom_call.1} parent=1 // pred_check_branch
      %31 = sbr.rel (0) target = $region21
    $region20: #{tpu_custom_call.1} parent=1 // pred_region
      _
    $region21: #{tpu_custom_call.1} parent=1 // pred_fallthru
      _
    // Predicated region
    $region22: #{tpu_custom_call.1} parent=1 // pred_check
      _
    $region23: #{tpu_custom_call.1} parent=1 // pred_check_branch
      %33 = sbr.rel (0) target = $region25
    $region24: #{tpu_custom_call.1} parent=1 // pred_region
      %34 = dma.done [#allocation3], 128
    $region25: #{tpu_custom_call.1} parent=1 // pred_fallthru
      _
    %v36 = vld [vmem:[%s0] sm:$0xff]
    %v37 = vld [vmem:[%s1] sm:$0x1]
    %39 = vset.pattern.permute.xlu0 0
    %40 = vperm.xlu0 %39, %v36
    %v41 = vpop.permute.xlu0 %40
    %v44 = vlaneseq
    %v45 = vshrl.u32 %v44, 7
    %v46 = vsub.s32 0, %v45
    %v47 = vrot.slane %v37, %v46
    %v49 = vmul.f32 %v41, %v47
    %v50 = vand.u32 2147483647, %v49
    %vm51 = vcmp.le.f32.partialorder %v50, 0.7853982
    %vm52 = vcmp.lt.s32.totalorder %v49, 0
    %v53 = vand.u32 %v49, 2139095040
    %v54 = vshrl.u32 %v53, 23
    %v55 = vsub.s32 %v54, 127
    %v56 = vand.u32 2147483647, %v49
    %v57 = vand.u32 %v56, 8388607
    %v58 = vor.u32 %v57, 8388608
    %v59 = vsub.s32 0, %v58
    %v60 = vadd.s32 %v55, 1
    %vm61 = vcmp.gt.s32.totalorder %v60, 0
    %v62 = vsel %vm61, %v60, 0
    %v63 = vshrl.u32 %v62, 5
    %v64 = vand.u32 %v62, 31
    %v65 = vsub.s32 32, %v64
    %v66 = vshrl.u32 683565275, %v65
    %v67 = vshll.u32 683565275, %v64
    %v68 = vshrl.u32 2475754826, %v65
    %v69 = vor.u32 %v67, %v68
    %v70 = vshll.u32 2475754826, %v64
    %v71 = vshrl.u32 2131351028, %v65
    %v72 = vor.u32 %v70, %v71
    %v73 = vshll.u32 2131351028, %v64
    %v74 = vshrl.u32 2102212464, %v65
    %v75 = vor.u32 %v73, %v74
    %v76 = vshll.u32 2102212464, %v64
    %v77 = vshrl.u32 920167782, %v65
    %v78 = vor.u32 %v76, %v77
    %v79 = vshll.u32 920167782, %v64
    %v80 = vshrl.u32 1326507024, %v65
    %v81 = vor.u32 %v79, %v80
    %vm82 = vcmp.lt.s32.totalorder %v63, 1
    %vm83 = vcmp.lt.s32.totalorder %v63, 2
    %vm84 = vcmp.lt.s32.totalorder %v63, 3
    %vm85 = vcmp.lt.s32.totalorder %v63, 4
    %v86 = vsel %vm82, %v66, %v69
    %v87 = vsel %vm85, %v75, 2102212464
    %v88 = vsel %vm84, %v72, %v87
    %v89 = vsel %vm83, %v86, %v88
    %v90 = vsel %vm82, %v69, %v72
    %v91 = vsel %vm85, %v78, 920167782
    %v92 = vsel %vm84, %v75, %v91
    %v93 = vsel %vm83, %v90, %v92
    %v94 = vsel %vm82, %v72, %v75
    %v95 = vsel %vm85, %v81, 1326507024
    %v96 = vsel %vm84, %v78, %v95
    %v97 = vsel %vm83, %v94, %v96
    %v98 = vshll.u32 %v58, 8
    %v99 = vmul.u32.u64.compose %v98, %v97
    %v100 = vextract.low.u32 %v99
    %v101 = vextract.high.u32 %v99
    %v102 = vmul.u32.u64.compose %v98, %v93
    %v103 = vextract.low.u32 %v102
    %v104 = vextract.high.u32 %v102
    %v105 = vmul.u32 %v98, %v89
    %v106 = vadd.s32 %v101, %v103
    %vm107 = vc.u32 %v101, %v103
    %v108 = vadd.s32 %v104, 1
    %v109 = vsel %vm107, %v108, %v104
    %v110 = vadd.s32 %v105, %v109
    %v111 = vadd.s32 %v110, 536870912
    %v112 = vshrl.u32 %v111, 30
    %v113 = vshll.u32 %v112, 30
    %v114 = vsub.s32 %v110, %v113
    %vm115 = vcmp.lt.s32.totalorder %v114, 0
    %v116 = vsub.s32 0, %v114
    %v117 = vsel %vm115, %v116, %v114
    %v118 = vclz %v117
    %v119 = vsub.s32 %v118, 2
    %vm120 = vcmp.gt.s32.totalorder 0, %v119
    %v121 = vsel %vm120, 0, %v119
    %v122 = vsub.s32 32, %v121
    %v123 = vshll.u32 %v114, %v121
    %v124 = vshrl.u32 %v106, %v122
    %v125 = vor.u32 %v123, %v124
    %v126 = vsub.s32 4294967266, %v121
    %v127 = vadd.s32 %v126, 127
    %v128 = vshll.u32 %v127, 23
    %v129 = vor.u32 4788187, %v128
    %v130 = vand.u32 2147483647, %v129
    %v132 = vcvt.s32.f32 %v125
    %v133 = vmul.f32 %v132, %v130
    %v134 = vxor.u32 %v133, 2147483648
    %v135 = vsel %vm52, %v134, %v133
    %v136 = vsub.s32 4, %v112
    %v137 = vsel %vm52, %v136, %v112
    %v138 = vsel %vm51, %v49, %v135
    %v139 = vsel %vm51, 0, %v137
    %v140 = vcosq.f32.pop %v138
    %v141 = vsinq.f32.pop %v138
    %vm142 = vweird.f32 %v49
    %v143 = vand.u32 %v139, 3
    %vm144 = vcmp.lt.s32.totalorder %v143, 2
    %vm145 = vcmp.eq.s32.totalorder %v143, 0
    %v146 = vxor.u32 %v141, 2147483648
    %v147 = vsel %vm145, %v140, %v146
    %vm148 = vcmp.eq.s32.totalorder %v143, 2
    %v149 = vxor.u32 %v140, 2147483648
    %v150 = vsel %vm148, %v149, %v141
    %v151 = vsel %vm144, %v147, %v150
    %v152 = vsel %vm142, nan, %v151
    %v153 = vpack.c.bf16 %v152, %v152
    %v154 = vand.u32 2147483647, %v49
    %vm155 = vcmp.le.f32.partialorder %v154, 0.7853982
    %vm156 = vcmp.lt.s32.totalorder %v49, 0
    %v157 = vand.u32 %v49, 2139095040
    %v158 = vshrl.u32 %v157, 23
    %v159 = vsub.s32 %v158, 127
    %v160 = vand.u32 2147483647, %v49
    %v161 = vand.u32 %v160, 8388607
    %v162 = vor.u32 %v161, 8388608
    %v163 = vsub.s32 0, %v162
    %v164 = vadd.s32 %v159, 1
    %vm165 = vcmp.gt.s32.totalorder %v164, 0
    %v166 = vsel %vm165, %v164, 0
    %v167 = vshrl.u32 %v166, 5
    %v168 = vand.u32 %v166, 31
    %v169 = vsub.s32 32, %v168
    %v170 = vshrl.u32 683565275, %v169
    %v171 = vshll.u32 683565275, %v168
    %v172 = vshrl.u32 2475754826, %v169
    %v173 = vor.u32 %v171, %v172
    %v174 = vshll.u32 2475754826, %v168
    %v175 = vshrl.u32 2131351028, %v169
    %v176 = vor.u32 %v174, %v175
    %v177 = vshll.u32 2131351028, %v168
    %v178 = vshrl.u32 2102212464, %v169
    %v179 = vor.u32 %v177, %v178
    %v180 = vshll.u32 2102212464, %v168
    %v181 = vshrl.u32 920167782, %v169
    %v182 = vor.u32 %v180, %v181
    %v183 = vshll.u32 920167782, %v168
    %v184 = vshrl.u32 1326507024, %v169
    %v185 = vor.u32 %v183, %v184
    %vm186 = vcmp.lt.s32.totalorder %v167, 1
    %vm187 = vcmp.lt.s32.totalorder %v167, 2
    %vm188 = vcmp.lt.s32.totalorder %v167, 3
    %vm189 = vcmp.lt.s32.totalorder %v167, 4
    %v190 = vsel %vm186, %v170, %v173
    %v191 = vsel %vm189, %v179, 2102212464
    %v192 = vsel %vm188, %v176, %v191
    %v193 = vsel %vm187, %v190, %v192
    %v194 = vsel %vm186, %v173, %v176
    %v195 = vsel %vm189, %v182, 920167782
    %v196 = vsel %vm188, %v179, %v195
    %v197 = vsel %vm187, %v194, %v196
    %v198 = vsel %vm186, %v176, %v179
    %v199 = vsel %vm189, %v185, 1326507024
    %v200 = vsel %vm188, %v182, %v199
    %v201 = vsel %vm187, %v198, %v200
    %v202 = vshll.u32 %v162, 8
    %v203 = vmul.u32.u64.compose %v202, %v201
    %v204 = vextract.low.u32 %v203
    %v205 = vextract.high.u32 %v203
    %v206 = vmul.u32.u64.compose %v202, %v197
    %v207 = vextract.low.u32 %v206
    %v208 = vextract.high.u32 %v206
    %v209 = vmul.u32 %v202, %v193
    %v210 = vadd.s32 %v205, %v207
    %vm211 = vc.u32 %v205, %v207
    %v212 = vadd.s32 %v208, 1
    %v213 = vsel %vm211, %v212, %v208
    %v214 = vadd.s32 %v209, %v213
    %v215 = vadd.s32 %v214, 536870912
    %v216 = vshrl.u32 %v215, 30
    %v217 = vshll.u32 %v216, 30
    %v218 = vsub.s32 %v214, %v217
    %vm219 = vcmp.lt.s32.totalorder %v218, 0
    %v220 = vsub.s32 0, %v218
    %v221 = vsel %vm219, %v220, %v218
    %v222 = vclz %v221
    %v223 = vsub.s32 %v222, 2
    %vm224 = vcmp.gt.s32.totalorder 0, %v223
    %v225 = vsel %vm224, 0, %v223
    %v226 = vsub.s32 32, %v225
    %v227 = vshll.u32 %v218, %v225
    %v228 = vshrl.u32 %v210, %v226
    %v229 = vor.u32 %v227, %v228
    %v230 = vsub.s32 4294967266, %v225
    %v231 = vadd.s32 %v230, 127
    %v232 = vshll.u32 %v231, 23
    %v233 = vor.u32 4788187, %v232
    %v234 = vand.u32 2147483647, %v233
    %v236 = vcvt.s32.f32 %v229
    %v237 = vmul.f32 %v236, %v234
    %v238 = vxor.u32 %v237, 2147483648
    %v239 = vsel %vm156, %v238, %v237
    %v240 = vsub.s32 4, %v216
    %v241 = vsel %vm156, %v240, %v216
    %v242 = vsel %vm155, %v49, %v239
    %v243 = vsel %vm155, 0, %v241
    %v244 = vcosq.f32.pop %v242
    %v245 = vsinq.f32.pop %v242
    %vm246 = vweird.f32 %v49
    %v247 = vadd.s32 %v243, 3
    %v248 = vand.u32 %v247, 3
    %vm249 = vcmp.lt.s32.totalorder %v248, 2
    %vm250 = vcmp.eq.s32.totalorder %v248, 0
    %v251 = vxor.u32 %v245, 2147483648
    %v252 = vsel %vm250, %v244, %v251
    %vm253 = vcmp.eq.s32.totalorder %v248, 2
    %v254 = vxor.u32 %v244, 2147483648
    %v255 = vsel %vm253, %v254, %v245
    %v256 = vsel %vm249, %v252, %v255
    %v257 = vsel %vm246, nan, %v256
    %v258 = vpack.c.bf16 %v257, %v257
    %v259 = vld [vmem:[%s2] sm:$0xf]
    %v260 = vld [vmem:[%s2 + $0x4] sm:$0xf]
    %v261 = vld [vmem:[#allocation2] sm:$0xf]
    %v262 = vld [vmem:[#allocation2 + $0x4] sm:$0xf]
    %v265 = vunpack.c.l.b16 %v261
    %v266 = vunpack.c.l.b16 %v262
    %v267 = vpack.c.b16 %v266, %v265
    %vm269 = vcmask 130048
    %v271 = vsel %vm269, %v258, 0
    %273 = vmatprep.subr.bf16.mxu0 0
    %274 = vmatpush1.bf16.msra.mxu0 0
    %275 = vmatprep.subr.bf16.mxu0 0
    %276 = vmatpush1.bf16.msra.mxu0 0
    %277 = vmatprep.subr.bf16.mxu0 0
    %278 = vmatpush1.bf16.msra.mxu0 0
    %279 = vmatprep.subr.bf16.mxu0 0
    %280 = vmatpush1.bf16.msra.mxu0 0
    %281 = vmatprep.subr.bf16.mxu0 0
    %282 = vmatpush1.bf16.msra.mxu0 0
    %283 = vmatprep.subr.bf16.mxu0 0
    %284 = vmatpush1.bf16.msra.mxu0 0
    %285 = vmatprep.subr.bf16.mxu0 0
    %286 = vmatpush1.bf16.msra.mxu0 0
    %287 = vmatprep.subr.bf16.mxu0 0
    %288 = vmatpush1.bf16.msra.mxu0 %v267
    %289 = vmatprep.subr.bf16.mxu0 0
    %290 = vmatpush2.bf16.msra.mxu0 0
    %291 = vmatprep.subr.bf16.mxu0 0
    %292 = vmatpush2.bf16.msra.mxu0 0
    %293 = vmatprep.subr.bf16.mxu0 0
    %294 = vmatpush2.bf16.msra.mxu0 0
    %295 = vmatprep.subr.bf16.mxu0 0
    %296 = vmatpush2.bf16.msra.mxu0 0
    %297 = vmatprep.subr.bf16.mxu0 0
    %298 = vmatpush2.bf16.msra.mxu0 0
    %299 = vmatprep.subr.bf16.mxu0 0
    %300 = vmatpush2.bf16.msra.mxu0 0
    %301 = vmatprep.subr.bf16.mxu0 0
    %302 = vmatpush2.bf16.msra.mxu0 0
    %303 = vmatprep.subr.bf16.mxu0 0
    %304 = vmatpush2.bf16.msra.mxu0 0
    %305 = vmatprep.mubr.bf16.mxu0 0
    %306 = vmatmul.mubr.bf16.gmra.mxu0 %v271
    %v307 = vpop.f32.mrf.mxu0
    %v308 = vadd.f32 0.0, %v307
    %v309 = vpop.f32.mrf.mxu0
    %v310 = vpop.f32.mrf.mxu0
    %v311 = vpop.f32.mrf.mxu0
    %312 = vdwg.mxu0
    %v315 = vunpack.c.l.b16 %v259
    %v316 = vunpack.c.l.b16 %v260
    %v317 = vpack.c.b16 %v316, %v315
    %v320 = vsel %vm269, %v153, 0
    %322 = vmatprep.subr.bf16.mxu0 0
    %323 = vmatpush1.bf16.msra.mxu0 0
    %324 = vmatprep.subr.bf16.mxu0 0
    %325 = vmatpush1.bf16.msra.mxu0 0
    %326 = vmatprep.subr.bf16.mxu0 0
    %327 = vmatpush1.bf16.msra.mxu0 0
    %328 = vmatprep.subr.bf16.mxu0 0
    %329 = vmatpush1.bf16.msra.mxu0 0
    %330 = vmatprep.subr.bf16.mxu0 0
    %331 = vmatpush1.bf16.msra.mxu0 0
    %332 = vmatprep.subr.bf16.mxu0 0
    %333 = vmatpush1.bf16.msra.mxu0 0
    %334 = vmatprep.subr.bf16.mxu0 0
    %335 = vmatpush1.bf16.msra.mxu0 0
    %336 = vmatprep.subr.bf16.mxu0 0
    %337 = vmatpush1.bf16.msra.mxu0 %v317
    %338 = vmatprep.subr.bf16.mxu0 0
    %339 = vmatpush2.bf16.msra.mxu0 0
    %340 = vmatprep.subr.bf16.mxu0 0
    %341 = vmatpush2.bf16.msra.mxu0 0
    %342 = vmatprep.subr.bf16.mxu0 0
    %343 = vmatpush2.bf16.msra.mxu0 0
    %344 = vmatprep.subr.bf16.mxu0 0
    %345 = vmatpush2.bf16.msra.mxu0 0
    %346 = vmatprep.subr.bf16.mxu0 0
    %347 = vmatpush2.bf16.msra.mxu0 0
    %348 = vmatprep.subr.bf16.mxu0 0
    %349 = vmatpush2.bf16.msra.mxu0 0
    %350 = vmatprep.subr.bf16.mxu0 0
    %351 = vmatpush2.bf16.msra.mxu0 0
    %352 = vmatprep.subr.bf16.mxu0 0
    %353 = vmatpush2.bf16.msra.mxu0 0
    %354 = vmatprep.mubr.bf16.mxu0 0
    %355 = vmatmul.mubr.bf16.gmra.mxu0 %v320
    %v356 = vpop.f32.mrf.mxu0
    %v357 = vadd.f32 %v308, %v356
    %v358 = vpop.f32.mrf.mxu0
    %v359 = vpop.f32.mrf.mxu0
    %v360 = vpop.f32.mrf.mxu0
    %361 = vdwg.mxu0
    %v362 = vld [vmem:[%s4] sm:$0x1]
    %v364 = vlaneseq
    %v365 = vshrl.u32 %v364, 7
    %v366 = vsub.s32 0, %v365
    %v367 = vrot.slane %v362, %v366
    %v369 = vadd.f32 %v357, %v367
    %v370 = vxor.u32 %v369, 2147483648
    %v371 = vmul.f32 %v370, 1.442695
    %v372 = vpow.pop %v371
    %v373 = vadd.f32 %v372, 1.0
    %v374 = vrcp.pop %v373
    %v375 = vmul.f32 1.0, %v374
    %v376 = vmul.f32 %v369, %v375
    %v377 = vpack.c.bf16 %v376, %v376
    %378 = vst [vmem:[#allocation5] sm:$0xf] %v377
    // Predicated region
    $region26: #{tpu_custom_call.1} parent=1 // pred_check
      _
    $region27: #{tpu_custom_call.1} parent=1 // pred_check_branch
      %380 = sbr.rel (0) target = $region29
    $region28: #{tpu_custom_call.1} parent=1 // pred_region
      %s382 = ssub.s32 64, 64
      %383 = vsyncadd [#allocation4], %s382
      %s385 = sshll.u32 [#allocation5], 4
      %s386 = int_to_ptr.vmem [resolvable:$true] %s385
      %388 = dma.vmem_to_hbm [thread:$0]  %s386, 64, %s5, [#allocation4]
    $region29: #{tpu_custom_call.1} parent=1 // pred_fallthru
      _
    // Predicated region
    $region30: #{tpu_custom_call.1} parent=1 // pred_check
      _
    $region31: #{tpu_custom_call.1} parent=1 // pred_check_branch
      %390 = sbr.rel (0) target = $region33
    $region32: #{tpu_custom_call.1} parent=1 // pred_region
      %391 = dma.done [#allocation4], 64
    $region33: #{tpu_custom_call.1} parent=1 // pred_fallthru
      _
    %392 = vsyncpa [#allocation3], 1
    %393 = vsyncpa [#allocation4], 1

</llo_original>
